<compile_context>
chip_gen: v5e
topology: v5e:2x2
jax: 0.10.0
libtpu: 0.0.40
codegen_flags: <defaults>
</compile_context>

<pallas_src>
import math
from functools import partial

import numpy as np
import jax
import jax.numpy as jnp
from jax.experimental import pallas as pl
from jax.experimental.pallas import tpu as pltpu


# ----------------------- VMEM budget (generation aware) ----------------------

def _vmem_capacity_bytes():
    try:
        return int(pltpu.get_tpu_info().vmem_capacity_bytes)
    except Exception:
        return 64 * 1024 * 1024          # v7x-safe fallback

_VMEM_CAP = _vmem_capacity_bytes()
# Raise the scoped limit above the 16/32 MiB defaults but stay well under physical.
_VMEM_LIMIT = int(min((_VMEM_CAP * 3) // 4, 100 * 1024 * 1024))
# Working-set budget for one pipelined step (includes double buffering).
_TILE_BUDGET = int(_VMEM_LIMIT * 0.55)


# ------------------------------- tiling utils -------------------------------

def _pick_tile(dim, target, mult):
    """Largest tile <= target that is a multiple of `mult` and divides `dim`;
    falls back to the full dim (always legal as a whole-array block)."""
    if dim <= target:
        return dim
    if dim % mult != 0:
        return dim
    t = (min(target, dim) // mult) * mult
    while t >= mult:
        if dim % t == 0:
            return t
        t -= mult
    return dim


def _tile_candidates(dim, mult, cap):
    """Divisors of `dim` that are multiples of `mult` (capped at `cap`), plus the
    full dim if it fits the cap; descending order; never empty."""
    cands = set()
    if dim <= cap:
        cands.add(dim)
    t = (min(cap, dim) // mult) * mult
    while t >= mult:
        if dim % t == 0:
            cands.add(t)
        t -= mult
    if not cands:
        cands.add(dim)
    return sorted(cands, reverse=True)


def _fullk_step_bytes(tm, tn, K, has_res, has_ln):
    """Approx VMEM working set (bytes) of one (i, j) step of the full-K path,
    including double buffering."""
    bf = 2
    step = tm * K * bf + K * tn * bf + tm * tn * bf + tn * 4
    if has_res:
        step += tm * tn * bf
    if has_ln:
        step += 2 * K * 4
    return 2 * step


# ----------------------------- Pallas kernels ------------------------------

def _fused_linear_kernel(*refs, act, has_ln, has_res, eps):
    """Full-K linear: [LayerNorm prologue] -> matmul -> bias [-> GELU] [-> +res]."""
    it = iter(refs)
    x_ref, w_ref, b_ref = next(it), next(it), next(it)
    g_ref = next(it) if has_ln else None
    bl_ref = next(it) if has_ln else None
    r_ref = next(it) if has_res else None
    o_ref = next(it)

    if has_ln:
        xf = x_ref[...].astype(jnp.float32)
        mean = jnp.mean(xf, axis=-1, keepdims=True)
        c = xf - mean
        var = jnp.mean(c * c, axis=-1, keepdims=True)
        x = (c * jax.lax.rsqrt(var + eps) * g_ref[...] + bl_ref[...]).astype(jnp.bfloat16)
    else:
        x = x_ref[...]

    y = jnp.dot(x, w_ref[...], preferred_element_type=jnp.float32) + b_ref[...]
    if act:
        y = jax.nn.gelu(y, approximate=True)
    if has_res:
        y = y + r_ref[...].astype(jnp.float32)
    o_ref[...] = y.astype(o_ref.dtype)


def _linear_kernel(x_ref, w_ref, b_ref, o_ref, acc_ref, *, act):
    """K-tiled fallback (accumulator) path."""
    @pl.when(pl.program_id(2) == 0)
    def _():
        acc_ref[...] = jnp.zeros_like(acc_ref)

    acc_ref[...] += jnp.dot(x_ref[...], w_ref[...],
                            preferred_element_type=jnp.float32)

    @pl.when(pl.program_id(2) == pl.num_programs(2) - 1)
    def _():
        y = acc_ref[...] + b_ref[...]
        if act:
            y = jax.nn.gelu(y, approximate=True)
        o_ref[...] = y.astype(o_ref.dtype)


def _linear_res_kernel(x_ref, w_ref, b_ref, r_ref, o_ref, acc_ref, *, act):
    @pl.when(pl.program_id(2) == 0)
    def _():
        acc_ref[...] = jnp.zeros_like(acc_ref)

    acc_ref[...] += jnp.dot(x_ref[...], w_ref[...],
                            preferred_element_type=jnp.float32)

    @pl.when(pl.program_id(2) == pl.num_programs(2) - 1)
    def _():
        y = acc_ref[...] + b_ref[...]
        if act:
            y = jax.nn.gelu(y, approximate=True)
        y = y + r_ref[...].astype(jnp.float32)
        o_ref[...] = y.astype(o_ref.dtype)


def _layernorm_kernel(x_ref, g_ref, b_ref, o_ref, *, eps):
    x = x_ref[...].astype(jnp.float32)
    mean = jnp.mean(x, axis=-1, keepdims=True)
    c = x - mean
    var = jnp.mean(c * c, axis=-1, keepdims=True)
    xn = c * jax.lax.rsqrt(var + eps)
    o_ref[...] = (xn * g_ref[...] + b_ref[...]).astype(o_ref.dtype)


def _self_attn_kernel(qkv_ref, o_ref, *, num_heads, d_model, scale):
    """Self-attention over a fused (1, L, 3D) QKV block.
    Heads are sliced directly off the ref (no whole (L, 3D) value load) and each
    head's output is stored directly into its column slice (no concat)."""
    dh = d_model // num_heads
    for h in range(num_heads):
        q = qkv_ref[0, :, h * dh:(h + 1) * dh]
        k = qkv_ref[0, :, d_model + h * dh:d_model + (h + 1) * dh]
        v = qkv_ref[0, :, 2 * d_model + h * dh:2 * d_model + (h + 1) * dh]
        s = jax.lax.dot_general(q, k, (((1,), (1,)), ((), ())),
                                preferred_element_type=jnp.float32) * scale
        s = s - jnp.max(s, axis=-1, keepdims=True)
        p = jnp.exp(s)
        p = p * pl.reciprocal(jnp.sum(p, axis=-1, keepdims=True), approx=True)
        o = jnp.dot(p.astype(v.dtype), v, preferred_element_type=jnp.float32)
        o_ref[0, :, h * dh:(h + 1) * dh] = o.astype(o_ref.dtype)


def _cross_attn_kernel(q_ref, k_ref, v_ref, o_ref, *, num_heads, scale):
    """Cross-attention (resampler): separate Q / K / V refs, per-head ref slices
    and per-head stores."""
    D = q_ref.shape[-1]
    dh = D // num_heads
    for h in range(num_heads):
        qh = q_ref[0, :, h * dh:(h + 1) * dh]
        kh = k_ref[0, :, h * dh:(h + 1) * dh]
        vh = v_ref[0, :, h * dh:(h + 1) * dh]
        s = jax.lax.dot_general(qh, kh, (((1,), (1,)), ((), ())),
                                preferred_element_type=jnp.float32) * scale
        s = s - jnp.max(s, axis=-1, keepdims=True)
        p = jnp.exp(s)
        p = p * pl.reciprocal(jnp.sum(p, axis=-1, keepdims=True), approx=True)
        o = jnp.dot(p.astype(vh.dtype), vh, preferred_element_type=jnp.float32)
        o_ref[0, :, h * dh:(h + 1) * dh] = o.astype(o_ref.dtype)


# ------------------------------ kernel wrappers ------------------------------

def layernorm_pallas(x, g, b, eps=1e-5):
    """x: (M, D) bf16, g/b: (1, D) f32 -> (M, D) bf16 (PyTorch LayerNorm eps=1e-5)."""
    M, D = x.shape
    tm = _pick_tile(M, 512, 8)
    return pl.pallas_call(
        partial(_layernorm_kernel, eps=eps),
        out_shape=jax.ShapeDtypeStruct((M, D), jnp.bfloat16),
        grid=(M // tm,),
        in_specs=[
            pl.BlockSpec((tm, D), lambda i: (i, 0)),
            pl.BlockSpec((1, D), lambda i: (0, 0)),
            pl.BlockSpec((1, D), lambda i: (0, 0)),
        ],
        out_specs=pl.BlockSpec((tm, D), lambda i: (i, 0)),
        compiler_params=pltpu.CompilerParams(
            dimension_semantics=("parallel",),
            vmem_limit_bytes=_VMEM_LIMIT),
    )(x, g, b)


def linear_pallas(x, w, b, act=False, residual=None, ln=None, eps=1e-5):
    """y = act(LN(x) @ w + b) [+ residual]   (all fused into one kernel when possible)

    x: (M, K) bf16, w: (K, N) bf16, b: (1, N) f32.
    residual: (M, N) bf16, or (R, N) bf16 with R | M (row-wrapped, e.g. a pos-emb
              table shared across the batch — never broadcast in HBM).
    ln: optional (gamma, beta), each (1, K) f32, fused into the matmul prologue
        whenever the full K dimension is resident per block."""
    M, K = x.shape
    N = w.shape[1]
    tn = _pick_tile(N, 512, 128)

    res_rows = None if residual is None else residual.shape[0]
    if res_rows is not None:
        assert M % res_rows == 0
    row_dim = M if res_rows in (None, M) else res_rows

    # ---- full-K path: no K grid axis, large row tiles, LN fused in prologue ----
    tm = None
    for cand in _tile_candidates(row_dim, 8, 1024):
        if _fullk_step_bytes(cand, tn, K, residual is not None,
                             ln is not None) <= _TILE_BUDGET:
            tm = cand
            break

    if tm is not None:
        in_specs = [
            pl.BlockSpec((tm, K), lambda i, j: (i, 0)),
            pl.BlockSpec((K, tn), lambda i, j: (0, j)),
            pl.BlockSpec((1, tn), lambda i, j: (0, j)),
        ]
        args = [x, w, b]
        if ln is not None:
            in_specs += [pl.BlockSpec((1, K), lambda i, j: (0, 0)),
                         pl.BlockSpec((1, K), lambda i, j: (0, 0))]
            args += [ln[0], ln[1]]
        if residual is not None:
            if res_rows == M:
                in_specs.append(pl.BlockSpec((tm, tn), lambda i, j: (i, j)))
            else:
                nb = res_rows // tm
                in_specs.append(
                    pl.BlockSpec((tm, tn), lambda i, j, nb=nb: (i % nb, j)))
            args.append(residual)

        return pl.pallas_call(
            partial(_fused_linear_kernel, act=act, has_ln=ln is not None,
                    has_res=residual is not None, eps=eps),
            out_shape=jax.ShapeDtypeStruct((M, N), jnp.bfloat16),
            grid=(M // tm, N // tn),
            in_specs=in_specs,
            out_specs=pl.BlockSpec((tm, tn), lambda i, j: (i, j)),
            compiler_params=pltpu.CompilerParams(
                dimension_semantics=("parallel", "parallel"),
                vmem_limit_bytes=_VMEM_LIMIT),
        )(*args)

    # ---- fallback: K-tiled accumulator path (full-K tile does not fit VMEM) ----
    if ln is not None:
        x = layernorm_pallas(x, ln[0], ln[1], eps=eps)
    if residual is not None and res_rows != M:
        residual = jnp.tile(residual, (M // res_rows, 1))

    tm = _pick_tile(M, 512, 8)
    tk = _pick_tile(K, 512, 128)
    grid = (M // tm, N // tn, K // tk)
    in_specs = [
        pl.BlockSpec((tm, tk), lambda i, j, k: (i, k)),
        pl.BlockSpec((tk, tn), lambda i, j, k: (k, j)),
        pl.BlockSpec((1, tn), lambda i, j, k: (0, j)),
    ]
    args = [x, w, b]
    if residual is not None:
        in_specs.append(pl.BlockSpec((tm, tn), lambda i, j, k: (i, j)))
        args.append(residual)
        kernel = partial(_linear_res_kernel, act=act)
    else:
        kernel = partial(_linear_kernel, act=act)

    return pl.pallas_call(
        kernel,
        out_shape=jax.ShapeDtypeStruct((M, N), jnp.bfloat16),
        grid=grid,
        in_specs=in_specs,
        out_specs=pl.BlockSpec((tm, tn), lambda i, j, k: (i, j)),
        scratch_shapes=[pltpu.VMEM((tm, tn), jnp.float32)],
        compiler_params=pltpu.CompilerParams(
            dimension_semantics=("parallel", "parallel", "arbitrary"),
            vmem_limit_bytes=_VMEM_LIMIT),
    )(*args)


def self_attention_pallas(qkv, num_heads):
    """qkv: (B, L, 3D) bf16 (fused QKV projection output) -> (B, L, D) bf16."""
    B, L, threeD = qkv.shape
    D = threeD // 3
    scale = 1.0 / math.sqrt(D // num_heads)
    return pl.pallas_call(
        partial(_self_attn_kernel, num_heads=num_heads, d_model=D, scale=scale),
        out_shape=jax.ShapeDtypeStruct((B, L, D), jnp.bfloat16),
        grid=(B,),
        in_specs=[pl.BlockSpec((1, L, threeD), lambda b: (b, 0, 0))],
        out_specs=pl.BlockSpec((1, L, D), lambda b: (b, 0, 0)),
        compiler_params=pltpu.CompilerParams(
            dimension_semantics=("parallel",),
            vmem_limit_bytes=_VMEM_LIMIT),
    )(qkv)


def cross_attention_pallas(q, k, v, num_heads):
    """q: (B, Lq, D) bf16, k/v: (B, Lk, D) bf16 -> (B, Lq, D) bf16."""
    B, Lq, D = q.shape
    Lk = k.shape[1]
    scale = 1.0 / math.sqrt(D // num_heads)
    return pl.pallas_call(
        partial(_cross_attn_kernel, num_heads=num_heads, scale=scale),
        out_shape=jax.ShapeDtypeStruct((B, Lq, D), jnp.bfloat16),
        grid=(B,),
        in_specs=[
            pl.BlockSpec((1, Lq, D), lambda b: (b, 0, 0)),
            pl.BlockSpec((1, Lk, D), lambda b: (b, 0, 0)),
            pl.BlockSpec((1, Lk, D), lambda b: (b, 0, 0)),
        ],
        out_specs=pl.BlockSpec((1, Lq, D), lambda b: (b, 0, 0)),
        compiler_params=pltpu.CompilerParams(
            dimension_semantics=("parallel",),
            vmem_limit_bytes=_VMEM_LIMIT),
    )(q, k, v)


# ------------------------------ JAX glue layer ------------------------------

def linear3(x, w, b, act=False, residual=None, ln=None):
    B, L, K = x.shape
    r2 = None if residual is None else residual.reshape(B * L, -1)
    y = linear_pallas(x.reshape(B * L, K), w, b, act=act, residual=r2, ln=ln)
    return y.reshape(B, L, w.shape[1])


def layernorm3(x, g, b):
    B, L, D = x.shape
    return layernorm_pallas(x.reshape(B * L, D), g, b).reshape(B, L, D)


def transformer_block(x, p, heads):
    # ln1 fused into the fused-QKV matmul prologue (single activation read).
    qkv = linear3(x, p['wqkv'], p['bqkv'], ln=(p['ln1_g'], p['ln1_b']))
    a = self_attention_pallas(qkv, heads)
    x = linear3(a, p['wo'], p['bo'], residual=x)                 # fused residual
    # ln2 fused into the fc prologue; GELU fused into the epilogue.
    h = linear3(x, p['fc_w'], p['fc_b'], act=True, ln=(p['ln2_g'], p['ln2_b']))
    x = linear3(h, p['proj_w'], p['proj_b'], residual=x)         # fused residual
    return x


def resampler(x, p, cfg):
    """Qwen-VL attn_pool (Resampler): learnable queries cross-attend to patch tokens."""
    B, L, _ = x.shape
    O = cfg['output_dim']
    nq = cfg['n_queries']
    heads = cfg['resampler_heads']

    kv = linear3(x, p['kv_w'], p['zero_b_O'])                    # kv_proj (bias-free)
    kv = layernorm3(kv, p['ln_kv_g'], p['ln_kv_b'])
    q = layernorm_pallas(p['query'], p['ln_q_g'], p['ln_q_b'])   # (nq, O)
    # TODO(synk): get_abs_pos bicubic interpolation of pos_embed when the key grid
    #   differs from sqrt(n_queries) is not implemented (grids match here).
    q = jnp.broadcast_to(q[None], (B, nq, O)) + p['pos_embed'][None]
    k_in = kv + p['pos_embed'][None]

    q = linear3(q.astype(jnp.bfloat16), p['attn']['wq'], p['attn']['bq'])
    k = linear3(k_in.astype(jnp.bfloat16), p['attn']['wk'], p['attn']['bk'])
    v = linear3(kv, p['attn']['wv'], p['attn']['bv'])
    o = cross_attention_pallas(q, k, v, heads)
    return linear3(o, p['attn']['wo'], p['attn']['bo'])


def vit_forward(images, params, cfg):
    # mimic `.to(dtype=torch.bfloat16)`: bf16 storage / MXU operands, f32 accumulation
    x = images.astype(jnp.bfloat16)
    B = x.shape[0]
    ps = cfg['patch_size']
    grid = cfg['image_size'] // ps
    L = grid * grid
    D = cfg['width']

    # conv1 (stride=patch, bias=False) == unfold patches in (C, kh, kw) order + matmul
    xp = x.reshape(B, 3, grid, ps, grid, ps)
    xp = xp.transpose(0, 2, 4, 1, 3, 5).reshape(B * L, 3 * ps * ps)

    # pos-emb added in the matmul epilogue via a row-wrapped residual BlockSpec
    # (the (L, D) table is never broadcast to (B, L, D) in HBM).
    x = linear_pallas(xp, params['patch_w'], params['zero_b_D'],
                      residual=params['pos_emb'])
    x = x.reshape(B, L, D)

    x = layernorm3(x, params['ln_pre_g'], params['ln_pre_b'])
    for blk in params['blocks']:
        x = transformer_block(x, blk, cfg['heads'])

    x = resampler(x, params['resampler'], cfg)
    # ln_post fused into the final projection's prologue (x @ proj, no bias)
    x = linear3(x, params['proj'], params['zero_b_O'],
                ln=(params['ln_post_g'], params['ln_post_b']))
    return x.astype(jnp.bfloat16)


def qwen_clip_vision_tower_forward(images, params, cfg):
    """Matches QWenCLIPVisionTower.forward: list of CHW images or a batched NCHW tensor."""
    if isinstance(images, (list, tuple)):
        # stack into one batched call (amortizes weight streaming), then split back
        batch = jnp.stack(list(images), axis=0)
        feats = vit_forward(batch, params, cfg)
        return [feats[i:i + 1] for i in range(feats.shape[0])]
    return vit_forward(images, params, cfg)


# --------------------------- parameter construction -------------------------

def get_2d_sincos_pos_embed(embed_dim, grid_size):
    def get_1d(dim, pos):
        omega = np.arange(dim // 2, dtype=np.float64) / (dim / 2.0)
        omega = 1.0 / 10000 ** omega
        out = np.einsum('m,d->md', pos.reshape(-1).astype(np.float64), omega)
        return np.concatenate([np.sin(out), np.cos(out)], axis=1)

    grid_h = np.arange(grid_size, dtype=np.float32)
    grid_w = np.arange(grid_size, dtype=np.float32)
    g = np.meshgrid(grid_w, grid_h)
    g = np.stack(g, axis=0).reshape(2, grid_size, grid_size)
    emb_h = get_1d(embed_dim // 2, g[0])
    emb_w = get_1d(embed_dim // 2, g[1])
    return np.concatenate([emb_h, emb_w], axis=1).astype(np.float32)


def init_params(key, cfg):
    D = cfg['width']
    O = cfg['output_dim']
    ps = cfg['patch_size']
    grid = cfg['image_size'] // ps
    npatch = grid * grid
    H = D * cfg['mlp_ratio']
    nq = cfg['n_queries']

    keys = iter(jax.random.split(key, 256))

    def nrm(shape, scale=0.02):
        return scale * jax.random.normal(next(keys), shape, dtype=jnp.float32)

    def zeros(shape):
        return jnp.zeros(shape, jnp.float32)

    def ones(shape):
        return jnp.ones(shape, jnp.float32)

    def mha_params(dim):
        return dict(
            wq=nrm((dim, dim)), bq=zeros((1, dim)),
            wk=nrm((dim, dim)), bk=zeros((1, dim)),
            wv=nrm((dim, dim)), bv=zeros((1, dim)),
            wo=nrm((dim, dim)), bo=zeros((1, dim)),
        )

    params = dict(
        patch_w=nrm((3 * ps * ps, D)),
        zero_b_D=zeros((1, D)),
        pos_emb=nrm((npatch, D)),
        ln_pre_g=ones((1, D)), ln_pre_b=zeros((1, D)),
        blocks=[
            dict(
                ln1_g=ones((1, D)), ln1_b=zeros((1, D)),
                ln2_g=ones((1, D)), ln2_b=zeros((1, D)),
                attn=mha_params(D),
                fc_w=nrm((D, H)), fc_b=zeros((1, H)),
                proj_w=nrm((H, D)), proj_b=zeros((1, D)),
            )
            for _ in range(cfg['layers'])
        ],
        resampler=dict(
            query=nrm((nq, O)),
            pos_embed=jnp.asarray(get_2d_sincos_pos_embed(O, int(math.isqrt(nq)))),
            kv_w=nrm((D, O)),
            zero_b_O=zeros((1, O)),
            ln_kv_g=ones((1, O)), ln_kv_b=zeros((1, O)),
            ln_q_g=ones((1, O)), ln_q_b=zeros((1, O)),
            attn=mha_params(O),
        ),
        ln_post_g=ones((1, O)), ln_post_b=zeros((1, O)),
        proj=(O ** -0.5) * jax.random.normal(next(keys), (O, O), jnp.float32),
        zero_b_O=zeros((1, O)),
    )
    return params


def prepare_params(params, cfg):
    """Cast matmul weights to bf16 (MXU operands), keep biases / LN params in f32,
    and fuse each block's Wq/Wk/Wv into one (D, 3D) weight (one projection matmul)."""
    def bf(x):
        return x.astype(jnp.bfloat16)

    def f32(x):
        return x.astype(jnp.float32)

    def prep_block(b):
        a = b['attn']
        return dict(
            ln1_g=f32(b['ln1_g']), ln1_b=f32(b['ln1_b']),
            ln2_g=f32(b['ln2_g']), ln2_b=f32(b['ln2_b']),
            wqkv=bf(jnp.concatenate([a['wq'], a['wk'], a['wv']], axis=1)),
            bqkv=f32(jnp.concatenate([a['bq'], a['bk'], a['bv']], axis=1)),
            wo=bf(a['wo']), bo=f32(a['bo']),
            fc_w=bf(b['fc_w']), fc_b=f32(b['fc_b']),
            proj_w=bf(b['proj_w']), proj_b=f32(b['proj_b']),
        )

    r = params['resampler']
    res = dict(
        query=bf(r['query']),
        pos_embed=bf(r['pos_embed']),
        kv_w=bf(r['kv_w']),
        zero_b_O=f32(r['zero_b_O']),
        ln_kv_g=f32(r['ln_kv_g']), ln_kv_b=f32(r['ln_kv_b']),
        ln_q_g=f32(r['ln_q_g']), ln_q_b=f32(r['ln_q_b']),
        attn=dict(
            wq=bf(r['attn']['wq']), bq=f32(r['attn']['bq']),
            wk=bf(r['attn']['wk']), bk=f32(r['attn']['bk']),
            wv=bf(r['attn']['wv']), bv=f32(r['attn']['bv']),
            wo=bf(r['attn']['wo']), bo=f32(r['attn']['bo']),
        ),
    )
    return dict(
        patch_w=bf(params['patch_w']),
        zero_b_D=f32(params['zero_b_D']),
        pos_emb=bf(params['pos_emb']),
        ln_pre_g=f32(params['ln_pre_g']), ln_pre_b=f32(params['ln_pre_b']),
        blocks=[prep_block(b) for b in params['blocks']],
        resampler=res,
        ln_post_g=f32(params['ln_post_g']), ln_post_b=f32(params['ln_post_b']),
        proj=bf(params['proj']),
        zero_b_O=f32(params['zero_b_O']),
    )


# ----------------------------------- main -----------------------------------

if __name__ == "__main__":
    # Small synthetic "visual_config.json" (shapes kept TPU-tile friendly).
    cfg = dict(
        image_size=32,
        patch_size=8,
        width=128,
        layers=2,
        heads=4,
        mlp_ratio=4,
        n_queries=16,
        output_dim=128,
        resampler_heads=4,
    )

    key = jax.random.PRNGKey(0)
    pkey, xkey = jax.random.split(key)
    params = prepare_params(init_params(pkey, cfg), cfg)

    images = jax.random.normal(
        xkey, (2, 3, cfg['image_size'], cfg['image_size']), dtype=jnp.float32
    )

    out = qwen_clip_vision_tower_forward(images, params, cfg)
    out = jax.block_until_ready(out)

    assert out.shape == (2, cfg['n_queries'], cfg['output_dim']), out.shape
    assert out.dtype == jnp.bfloat16, out.dtype
    assert bool(jnp.all(jnp.isfinite(out.astype(jnp.float32))))

    print("KERNEL_OK")
</pallas_src>

<mosaic_0001>
module attributes {stable_mosaic.version = 11 : i64} {
  func.func @_fused_linear_kernel(%arg0: i32, %arg1: i32, %arg2: memref<16x192xbf16, #tpu.memory_space<vmem>>, %arg3: memref<192x128xbf16, #tpu.memory_space<vmem>>, %arg4: memref<1x128xf32, #tpu.memory_space<vmem>>, %arg5: memref<16x128xbf16, #tpu.memory_space<vmem>>, %arg6: memref<16x128xbf16, #tpu.memory_space<vmem>>) attributes {dimension_semantics = [#tpu.dimension_semantics<parallel>, #tpu.dimension_semantics<parallel>], iteration_bounds = array<i64: 2, 1>, scalar_prefetch = 0 : i64, scratch_operands = 0 : i64, tpu.core_type = #tpu.core_type<tc>, window_params = [{transform_indices = @transform_0, window_bounds = array<i64: 16, 192>}, {transform_indices = @transform_1, window_bounds = array<i64: 192, 128>}, {transform_indices = @transform_2, window_bounds = array<i64: 1, 128>}, {transform_indices = @transform_3, window_bounds = array<i64: 16, 128>}, {transform_indices = @transform_4, window_bounds = array<i64: 16, 128>}]} {
    %c0 = arith.constant 0 : index
    %c0_0 = arith.constant 0 : index
    %0 = vector.load %arg2[%c0, %c0_0] : memref<16x192xbf16, #tpu.memory_space<vmem>>, vector<16x192xbf16>
    %c0_1 = arith.constant 0 : index
    %c0_2 = arith.constant 0 : index
    %1 = vector.load %arg3[%c0_1, %c0_2] : memref<192x128xbf16, #tpu.memory_space<vmem>>, vector<192x128xbf16>
    %cst = arith.constant dense<0.000000e+00> : vector<16x128xf32>
    %2 = tpu.matmul %0, %1, %cst {dimension_numbers = #tpu.dot_dimension_numbers<[1], [0], [0], [1], [0, 0, 1, 1], [], []>} : vector<16x192xbf16>, vector<192x128xbf16>, vector<16x128xf32> -> vector<16x128xf32>
    %c0_3 = arith.constant 0 : index
    %c0_4 = arith.constant 0 : index
    %3 = vector.load %arg4[%c0_3, %c0_4] : memref<1x128xf32, #tpu.memory_space<vmem>>, vector<1x128xf32>
    %4 = vector.broadcast %3 : vector<1x128xf32> to vector<16x128xf32>
    %5 = arith.addf %2, %4 : vector<16x128xf32>
    %c0_5 = arith.constant 0 : index
    %c0_6 = arith.constant 0 : index
    %6 = vector.load %arg5[%c0_5, %c0_6] : memref<16x128xbf16, #tpu.memory_space<vmem>>, vector<16x128xbf16>
    %7 = arith.extf %6 : vector<16x128xbf16> to vector<16x128xf32>
    %8 = arith.addf %5, %7 : vector<16x128xf32>
    %9 = arith.truncf %8 : vector<16x128xf32> to vector<16x128xbf16>
    %c0_7 = arith.constant 0 : index
    %c0_8 = arith.constant 0 : index
    %10 = vector.load %arg6[%c0_7, %c0_8] : memref<16x128xbf16, #tpu.memory_space<vmem>>, vector<16x128xbf16>
    tpu.vector_store %arg6[%c0_7, %c0_8], %9 {strides = array<i32>} : memref<16x128xbf16, #tpu.memory_space<vmem>>, vector<16x128xbf16>,
    return
  }
  func.func @transform_0(%arg0: i32, %arg1: i32) -> (i32, i32) {
    %c0_i32 = arith.constant 0 : i32
    %c0_i32_0 = arith.constant 0 : i32
    return %arg0, %c0_i32 : i32, i32
  }
  func.func @transform_1(%arg0: i32, %arg1: i32) -> (i32, i32) {
    %c0_i32 = arith.constant 0 : i32
    %c0_i32_0 = arith.constant 0 : i32
    return %c0_i32, %arg1 : i32, i32
  }
  func.func @transform_2(%arg0: i32, %arg1: i32) -> (i32, i32) {
    %c0_i32 = arith.constant 0 : i32
    %c0_i32_0 = arith.constant 0 : i32
    return %c0_i32, %arg1 : i32, i32
  }
  func.func @transform_3(%arg0: i32, %arg1: i32) -> (i32, i32) {
    %c1_i32 = arith.constant 1 : i32
    %c0_i32 = arith.constant 0 : i32
    %0 = arith.cmpi eq, %c1_i32, %c0_i32 : i32
    %c1_i32_0 = arith.constant 1 : i32
    %1 = arith.select %0, %c1_i32_0, %c1_i32 : i32
    %2 = arith.remsi %arg0, %1 : i32
    %c0_i32_1 = arith.constant 0 : i32
    %3 = arith.cmpi ne, %2, %c0_i32_1 : i32
    %c0_i32_2 = arith.constant 0 : i32
    %4 = arith.cmpi slt, %2, %c0_i32_2 : i32
    %c0_i32_3 = arith.constant 0 : i32
    %5 = arith.cmpi slt, %1, %c0_i32_3 : i32
    %6 = arith.xori %4, %5 : i1
    %7 = arith.andi %6, %3 : i1
    %8 = arith.addi %2, %1 : i32
    %9 = arith.select %7, %8, %2 : i32
    %c0_i32_4 = arith.constant 0 : i32
    return %9, %arg1 : i32, i32
  }
  func.func @transform_4(%arg0: i32, %arg1: i32) -> (i32, i32) {
    %c0_i32 = arith.constant 0 : i32
    return %arg0, %arg1 : i32, i32
  }
}

</mosaic_0001>

<llo_original>
// kernel: tpu_custom_call.1
$region0: #{tpu_custom_call.1}
  #allocation0 [shape = 'u32[]', space=smem, size = 0x4, offset = 0x4, fixed_abs, tag = 'smem constant byte address 0x4 - core index']
  #allocation1 [shape = 'u32[72,128]{1,0:T(1,128)}', space=vmem, size = 0x9000, scoped, tag = 'internal scratch']
  %s0 = inlined_call_operand.hbm [shape: bf16[32,192], index: 0, kind: input, shape index: {}]
  %s1 = inlined_call_operand.hbm [shape: bf16[192,128], index: 1, kind: input, shape index: {}]
  %s2 = inlined_call_operand.vmem [shape: f32[1,128], index: 2, kind: input, shape index: {}]
  %s3 = inlined_call_operand.hbm [shape: bf16[16,128], index: 3, kind: input, shape index: {}]
  %s4 = inlined_call_operand.hbm [shape: bf16[32,128], index: 4, kind: output, shape index: {}]
  %s5 = sld [smem:[#allocation0]]
  $region61: #{tpu_custom_call.1} parent=0
    _
  %s7 = ssub.s32 1, %s5
  %s8 = scalar_select 0, %s7, %s5
  $region1: #{tpu_custom_call.1} parent=0
    #allocation2 [shape = 'u8[16384]{0}', space=vmem, size = 0x4000, scoped, tag = 'input window, operand 0']
    #allocation3 [shape = 's32[2]{0}', space=sflag, size = 0x8, scoped, tag = 'scoped memory for tpu_custom_call.1']
    #allocation4 [shape = 's32[2]{0}', space=sflag, size = 0x8, scoped, tag = 'scoped memory for tpu_custom_call.1']
    #allocation5 [shape = 'u8[49152]{0}', space=vmem, size = 0xc000, scoped, tag = 'input window, operand 1, single buffered']
    #allocation6 [shape = 's32[1]{0}', space=sflag, size = 0x4, scoped, tag = 'scoped memory for tpu_custom_call.1']
    #allocation7 [shape = 'u8[4096]{0}', space=vmem, size = 0x1000, scoped, tag = 'input window, operand 3, single buffered']
    #allocation8 [shape = 'u8[8192]{0}', space=vmem, size = 0x2000, scoped, tag = 'output window, operand 0']
    %9 = vsyncpa [#allocation3], 0
    %s10 = scalar_lea.sflag [#allocation3], 1
    %11 = vsyncpa %s10, 0
    %12 = vsyncpa [#allocation6], 0
    %13 = vsyncpa [#allocation4], 0
    %s14 = scalar_lea.sflag [#allocation4], 1
    %15 = vsyncpa %s14, 0
    loop: start=0, step=1, limit=4
    $region2: #{tpu_custom_call.1} parent=1 // loop_pre_header
      _
    $region3: #{tpu_custom_call.1} parent=1 // loop_header
      %s17 = sphi 0, %s21
      %p18 = scmp.ge.s32.totalorder %s17, 4
      %s24 = sphi 0, %s36
      %s25 = sphi 0, %s32
      %s26 = sphi 0, %s24
      %s27 = sphi 0, %s25
      %s28 = sphi 0, %s26
      %s29 = sphi 0, %s27
      %s39 = sphi 0, %s41
      %s42 = sphi 0, %s39
      %s43 = sphi 0, %s42
      %s59 = sphi 0, %s43
      %s65 = sphi 0, %s67
      %s68 = sphi 0, %s65
      %s69 = sphi 0, %s68
      %s85 = sphi 0, %s69
      %s91 = sphi 0, %s93
      %s94 = sphi 0, %s91
      %s95 = sphi 0, %s94
      %s111 = sphi 0, %s95
      %s117 = sphi 0, %s119
      %s120 = sphi 0, %s117
      %s121 = sphi 0, %s120
      %s137 = sphi 0, %s121
      %s145 = sphi 0, %s147
      %s148 = sphi 0, %s145
      %s149 = sphi 0, %s148
      %s165 = sphi 0, %s149
    $region4: #{tpu_custom_call.1} parent=1 // loop_header_branch
      %20 = sbr.rel (%p18) target = $region8
    $region5: #{tpu_custom_call.1} parent=1 // loop_body
      %s22 = ssub.s32 %s17, 1
      %s23 = ssub.s32 %s17, 2
      %s30 = sadd.s32 1, %s25
      %p31 = scmp.ge.s32.totalorder %s30, 1
      %s32 = scalar_select %p31, 0, %s30
      %s33 = sadd.s32 1, %s24
      %s34 = scalar_select %p31, %s33, %s24
      %p35 = scmp.ge.s32.totalorder %s34, 2
      %s36 = scalar_select %p35, 0, %s34
      %s37 = ssub.s32 %s24, %s36
      %p38 = scmp.eq.s32.totalorder %s37, 0
      %s40 = sadd.s32 %s39, 1
      %s41 = scalar_select %p38, %s39, %s40
      %p44 = pneg %p38
      %p45 = scmp.eq.s32.totalorder %s17, 1
      %p46 = por %p44, %p45
      %p47 = scmp.ne.s32.totalorder %s39, %s42
      %p48 = scmp.eq.s32.totalorder %s17, 0
      %p49 = por %p47, %p48
      %p50 = scmp.ne.s32.totalorder %s39, %s42
      %p51 = scmp.eq.s32.totalorder %s22, 1
      %p52 = por %p50, %p51
      %p53 = scmp.ne.s32.totalorder %s42, %s43
      %p54 = scmp.eq.s32.totalorder %s22, 0
      %p55 = por %p53, %p54
      %p56 = scmp.ne.s32.totalorder %s42, %s43
      %p57 = scmp.eq.s32.totalorder %s23, 1
      %p58 = por %p56, %p57
      %p60 = scmp.ne.s32.totalorder %s43, %s59
      %p61 = scmp.eq.s32.totalorder %s23, 0
      %p62 = por %p60, %p61
      %s63 = ssub.s32 %s25, %s32
      %p64 = scmp.eq.s32.totalorder %s63, 0
      %s66 = sadd.s32 %s65, 1
      %s67 = scalar_select %p64, %s65, %s66
      %p70 = pneg %p64
      %p71 = scmp.eq.s32.totalorder %s17, 1
      %p72 = por %p70, %p71
      %p73 = scmp.ne.s32.totalorder %s65, %s68
      %p74 = scmp.eq.s32.totalorder %s17, 0
      %p75 = por %p73, %p74
      %p76 = scmp.ne.s32.totalorder %s65, %s68
      %p77 = scmp.eq.s32.totalorder %s22, 1
      %p78 = por %p76, %p77
      %p79 = scmp.ne.s32.totalorder %s68, %s69
      %p80 = scmp.eq.s32.totalorder %s22, 0
      %p81 = por %p79, %p80
      %p82 = scmp.ne.s32.totalorder %s68, %s69
      %p83 = scmp.eq.s32.totalorder %s23, 1
      %p84 = por %p82, %p83
      %p86 = scmp.ne.s32.totalorder %s69, %s85
      %p87 = scmp.eq.s32.totalorder %s23, 0
      %p88 = por %p86, %p87
      %s89 = ssub.s32 %s25, %s32
      %p90 = scmp.eq.s32.totalorder %s89, 0
      %s92 = sadd.s32 %s91, 1
      %s93 = scalar_select %p90, %s91, %s92
      %p96 = pneg %p90
      %p97 = scmp.eq.s32.totalorder %s17, 1
      %p98 = por %p96, %p97
      %p99 = scmp.ne.s32.totalorder %s91, %s94
      %p100 = scmp.eq.s32.totalorder %s17, 0
      %p101 = por %p99, %p100
      %p102 = scmp.ne.s32.totalorder %s91, %s94
      %p103 = scmp.eq.s32.totalorder %s22, 1
      %p104 = por %p102, %p103
      %p105 = scmp.ne.s32.totalorder %s94, %s95
      %p106 = scmp.eq.s32.totalorder %s22, 0
      %p107 = por %p105, %p106
      %p108 = scmp.ne.s32.totalorder %s94, %s95
      %p109 = scmp.eq.s32.totalorder %s23, 1
      %p110 = por %p108, %p109
      %p112 = scmp.ne.s32.totalorder %s95, %s111
      %p113 = scmp.eq.s32.totalorder %s23, 0
      %p114 = por %p112, %p113
      %s115 = ssub.s32 %s25, %s32
      %p116 = scmp.eq.s32.totalorder %s115, 0
      %s118 = sadd.s32 %s117, 1
      %s119 = scalar_select %p116, %s117, %s118
      %p122 = pneg %p116
      %p123 = scmp.eq.s32.totalorder %s17, 1
      %p124 = por %p122, %p123
      %p125 = scmp.ne.s32.totalorder %s117, %s120
      %p126 = scmp.eq.s32.totalorder %s17, 0
      %p127 = por %p125, %p126
      %p128 = scmp.ne.s32.totalorder %s117, %s120
      %p129 = scmp.eq.s32.totalorder %s22, 1
      %p130 = por %p128, %p129
      %p131 = scmp.ne.s32.totalorder %s120, %s121
      %p132 = scmp.eq.s32.totalorder %s22, 0
      %p133 = por %p131, %p132
      %p134 = scmp.ne.s32.totalorder %s120, %s121
      %p135 = scmp.eq.s32.totalorder %s23, 1
      %p136 = por %p134, %p135
      %p138 = scmp.ne.s32.totalorder %s121, %s137
      %p139 = scmp.eq.s32.totalorder %s23, 0
      %p140 = por %p138, %p139
      %s141 = ssub.s32 %s24, %s36
      %s142 = ssub.s32 %s25, %s32
      %s143 = sor.u32 %s141, %s142
      %p144 = scmp.eq.s32.totalorder %s143, 0
      %s146 = sadd.s32 %s145, 1
      %s147 = scalar_select %p144, %s145, %s146
      %p150 = pneg %p144
      %p151 = scmp.eq.s32.totalorder %s17, 1
      %p152 = por %p150, %p151
      %p153 = scmp.ne.s32.totalorder %s145, %s148
      %p154 = scmp.eq.s32.totalorder %s17, 0
      %p155 = por %p153, %p154
      %p156 = scmp.ne.s32.totalorder %s145, %s148
      %p157 = scmp.eq.s32.totalorder %s22, 1
      %p158 = por %p156, %p157
      %p159 = scmp.ne.s32.totalorder %s148, %s149
      %p160 = scmp.eq.s32.totalorder %s22, 0
      %p161 = por %p159, %p160
      %p162 = scmp.ne.s32.totalorder %s148, %s149
      %p163 = scmp.eq.s32.totalorder %s23, 1
      %p164 = por %p162, %p163
      %p166 = scmp.ne.s32.totalorder %s149, %s165
      %p167 = scmp.eq.s32.totalorder %s23, 0
      %p168 = por %p166, %p167
      %p169 = scmp.le.s32.totalorder 1, %s17
      %p170 = scmp.lt.s32.totalorder %s17, 3
      %p171 = pnand %p169, %p170
      %p172 = pneg %p171
      // Predicated region
      $region9: #{tpu_custom_call.1} parent=5 // pred_check
        _
      $region10: #{tpu_custom_call.1} parent=5 // pred_check_branch
        %174 = sbr.rel (%p171) target = $region12
      $region11: #{tpu_custom_call.1} parent=5 // pred_region
        %s175 = ssub.s32 %s17, 1
        // Predicated region
        $region13: #{tpu_custom_call.1} parent=11 // pred_check
          %p176 = pneg %p81
        $region14: #{tpu_custom_call.1} parent=11 // pred_check_branch
          %178 = sbr.rel (%p176) target = $region16
        $region15: #{tpu_custom_call.1} parent=11 // pred_region
          %180 = vsyncadd [#allocation6], 0
          %s181 = smul.addr %s27, 4
          %s182 = scalar_lea.hbm %s1, %s181
          %s183 = sshll.u32 %s182, 4
          %s184 = int_to_ptr.hbm [resolvable:$true] %s183
          %s185 = sshll.u32 [#allocation5], 4
          %s186 = int_to_ptr.vmem [resolvable:$true] %s185
          %191 = dma.hbm_to_vmem [thread:$0]  %s184, 1536, %s186, [#allocation6], 64, 64, 4
        $region16: #{tpu_custom_call.1} parent=11 // pred_fallthru
          _
        // Predicated region
        $region17: #{tpu_custom_call.1} parent=11 // pred_check
          %p192 = pneg %p107
        $region18: #{tpu_custom_call.1} parent=11 // pred_check_branch
          %194 = sbr.rel (%p192) target = $region20
        $region19: #{tpu_custom_call.1} parent=11 // pred_region
          %p195 = scmp.lt.s32.totalorder %s27, 0
          %s196 = scalar_select %p195, %s27, 0
          %s197 = scalar_lea.vmem %s2, %s196
        $region20: #{tpu_custom_call.1} parent=11 // pred_fallthru
          _
        // Predicated region
        $region21: #{tpu_custom_call.1} parent=11 // pred_check
          %p198 = pneg %p133
        $region22: #{tpu_custom_call.1} parent=11 // pred_check_branch
          %200 = sbr.rel (%p198) target = $region24
        $region23: #{tpu_custom_call.1} parent=11 // pred_region
          %202 = vsyncadd [#allocation6], 0
          %s203 = smul.addr %s27, 4
          %s204 = scalar_lea.hbm %s3, %s203
          %s205 = sshll.u32 %s204, 4
          %s206 = int_to_ptr.hbm [resolvable:$true] %s205
          %s207 = sshll.u32 [#allocation7], 4
          %s208 = int_to_ptr.vmem [resolvable:$true] %s207
          %213 = dma.hbm_to_vmem [thread:$0]  %s206, 128, %s208, [#allocation6], 64, 64, 4
        $region24: #{tpu_custom_call.1} parent=11 // pred_fallthru
          _
      $region12: #{tpu_custom_call.1} parent=5 // pred_fallthru
        _
      %p214 = scmp.lt.s32.totalorder %s17, 2
      // Predicated region
      $region25: #{tpu_custom_call.1} parent=5 // pred_check
        %p215 = pneg %p214
      $region26: #{tpu_custom_call.1} parent=5 // pred_check_branch
        %217 = sbr.rel (%p215) target = $region28
      $region27: #{tpu_custom_call.1} parent=5 // pred_region
        // Predicated region
        $region29: #{tpu_custom_call.1} parent=27 // pred_check
          %p218 = pneg %p49
        $region30: #{tpu_custom_call.1} parent=27 // pred_check_branch
          %220 = sbr.rel (%p218) target = $region32
        $region31: #{tpu_custom_call.1} parent=27 // pred_region
          %s221 = sand.u32 %s39, 1
          %s222 = scalar_lea.sflag [#allocation3], %s221
          %s223 = sand.u32 %s39, 1
          %s224 = smul.addr %s223, 16
          %s225 = scalar_lea.vmem [#allocation2], %s224
          %s226 = smul.u32 2, %s24
          %228 = vsyncadd %s222, 0
          %s229 = smul.addr %s226, 2
          %s230 = smul.addr %s229, 4
          %s231 = scalar_lea.hbm %s0, %s230
          %s232 = sshll.u32 %s231, 4
          %s233 = int_to_ptr.hbm [resolvable:$true] %s232
          %s234 = sshll.u32 %s225, 4
          %s235 = int_to_ptr.vmem [resolvable:$true] %s234
          %240 = dma.hbm_to_vmem [thread:$0]  %s233, 256, %s235, %s222, 128, 128, 8
        $region32: #{tpu_custom_call.1} parent=27 // pred_fallthru
          _
      $region28: #{tpu_custom_call.1} parent=5 // pred_fallthru
        _
      %p241 = scmp.le.s32.totalorder 1, %s17
      %p242 = scmp.lt.s32.totalorder %s17, 3
      %p243 = pnand %p241, %p242
      %p244 = pneg %p243
      // Predicated region
      $region33: #{tpu_custom_call.1} parent=5 // pred_check
        _
      $region34: #{tpu_custom_call.1} parent=5 // pred_check_branch
        %246 = sbr.rel (%p243) target = $region36
      $region35: #{tpu_custom_call.1} parent=5 // pred_region
        %s247 = ssub.s32 %s17, 1
        %s248 = sand.u32 %s42, 1
        %s249 = scalar_lea.sflag [#allocation3], %s248
        %s250 = sand.u32 %s42, 1
        %s251 = smul.addr %s250, 16
        %s252 = scalar_lea.vmem [#allocation2], %s251
        // Predicated region
        $region37: #{tpu_custom_call.1} parent=35 // pred_check
          %p253 = pneg %p55
        $region38: #{tpu_custom_call.1} parent=35 // pred_check_branch
          %255 = sbr.rel (%p253) target = $region40
        $region39: #{tpu_custom_call.1} parent=35 // pred_region
          %257 = dma.done %s249, 256
        $region40: #{tpu_custom_call.1} parent=35 // pred_fallthru
          _
        // Predicated region
        $region41: #{tpu_custom_call.1} parent=35 // pred_check
          %p258 = pneg %p81
        $region42: #{tpu_custom_call.1} parent=35 // pred_check_branch
          %260 = sbr.rel (%p258) target = $region44
        $region43: #{tpu_custom_call.1} parent=35 // pred_region
          %262 = dma.done [#allocation6], 1536
        $region44: #{tpu_custom_call.1} parent=35 // pred_fallthru
          _
        // Predicated region
        $region45: #{tpu_custom_call.1} parent=35 // pred_check
          %p263 = pneg %p133
        $region46: #{tpu_custom_call.1} parent=35 // pred_check_branch
          %265 = sbr.rel (%p263) target = $region48
        $region47: #{tpu_custom_call.1} parent=35 // pred_region
          %267 = dma.done [#allocation6], 128
        $region48: #{tpu_custom_call.1} parent=35 // pred_fallthru
          _
        %s268 = sand.u32 %s42, 1
        %s269 = scalar_lea.sflag [#allocation3], %s268
        %s270 = sand.u32 %s42, 1
        %s271 = smul.addr %s270, 16
        %s272 = scalar_lea.vmem [#allocation2], %s271
        %p273 = pneg %p55
        %p274 = pneg %p52
        %p275 = pneg %p81
        %p276 = pneg %p78
        %p277 = scmp.lt.s32.totalorder %s27, 0
        %s278 = scalar_select %p277, %s27, 0
        %s279 = scalar_lea.vmem %s2, %s278
        %p280 = pneg %p107
        %p281 = pneg %p104
        %p282 = pneg %p133
        %p283 = pneg %p130
        %p284 = pneg %p161
        %p285 = pneg %p158
        %s286 = sand.u32 %s148, 1
        %s287 = scalar_lea.sflag [#allocation4], %s286
        %s288 = sand.u32 %s148, 1
        %s289 = smul.addr %s288, 8
        %s290 = scalar_lea.vmem [#allocation8], %s289
        %s291 = smul.u32 2, %s26
        %p292 = scmp.lt.s32.totalorder %s27, 0
        %s293 = scalar_select %p292, %s27, 0
        %s294 = scalar_lea.vmem %s2, %s293
        %s295 = smul.u32 2, %s26
        %v297 = vld [vmem:[%s252] sm:$0xff]
        %v298 = vld [vmem:[%s252 + $0x8] sm:$0xff]
        %v299 = vld [vmem:[#allocation5] sm:$0xf]
        %v300 = vld [vmem:[#allocation5 + $0x4] sm:$0xf]
        %v301 = vld [vmem:[#allocation5 + $0x8] sm:$0xf]
        %v302 = vld [vmem:[#allocation5 + $0xc] sm:$0xf]
        %v303 = vld [vmem:[#allocation5 + $0x10] sm:$0xf]
        %v304 = vld [vmem:[#allocation5 + $0x14] sm:$0xf]
        %v305 = vld [vmem:[#allocation5 + $0x18] sm:$0xf]
        %v306 = vld [vmem:[#allocation5 + $0x1c] sm:$0xf]
        %v307 = vld [vmem:[#allocation5 + $0x20] sm:$0xf]
        %v308 = vld [vmem:[#allocation5 + $0x24] sm:$0xf]
        %v309 = vld [vmem:[#allocation5 + $0x28] sm:$0xf]
        %v310 = vld [vmem:[#allocation5 + $0x2c] sm:$0xf]
        %v311 = vld [vmem:[#allocation5 + $0x30] sm:$0xf]
        %v312 = vld [vmem:[#allocation5 + $0x34] sm:$0xf]
        %v313 = vld [vmem:[#allocation5 + $0x38] sm:$0xf]
        %v314 = vld [vmem:[#allocation5 + $0x3c] sm:$0xf]
        %v315 = vld [vmem:[#allocation5 + $0x40] sm:$0xf]
        %v316 = vld [vmem:[#allocation5 + $0x44] sm:$0xf]
        %v317 = vld [vmem:[#allocation5 + $0x48] sm:$0xf]
        %v318 = vld [vmem:[#allocation5 + $0x4c] sm:$0xf]
        %v319 = vld [vmem:[#allocation5 + $0x50] sm:$0xf]
        %v320 = vld [vmem:[#allocation5 + $0x54] sm:$0xf]
        %v321 = vld [vmem:[#allocation5 + $0x58] sm:$0xf]
        %v322 = vld [vmem:[#allocation5 + $0x5c] sm:$0xf]
        %v323 = vld [vmem:[%s294] sm:$0x1]
        %v325 = vperm.slane %v323, 0
        %v329 = vunpack.c.l.b16 %v297
        %v330 = vunpack.c.h.b16 %v297
        %v331 = vunpack.c.l.b16 %v298
        %v332 = vunpack.c.h.b16 %v298
        %v333 = vpack.c.b16 %v331, %v329
        %v334 = vpack.c.b16 %v332, %v330
        %v360 = vunpack.c.l.b16 %v299
        %v361 = vunpack.c.l.b16 %v300
        %v362 = vunpack.c.l.b16 %v301
        %v363 = vunpack.c.l.b16 %v302
        %v364 = vunpack.c.l.b16 %v303
        %v365 = vunpack.c.l.b16 %v304
        %v366 = vunpack.c.l.b16 %v305
        %v367 = vunpack.c.l.b16 %v306
        %v368 = vunpack.c.l.b16 %v307
        %v369 = vunpack.c.l.b16 %v308
        %v370 = vunpack.c.l.b16 %v309
        %v371 = vunpack.c.l.b16 %v310
        %v372 = vunpack.c.l.b16 %v311
        %v373 = vunpack.c.l.b16 %v312
        %v374 = vunpack.c.l.b16 %v313
        %v375 = vunpack.c.l.b16 %v314
        %v376 = vunpack.c.l.b16 %v315
        %v377 = vunpack.c.l.b16 %v316
        %v378 = vunpack.c.l.b16 %v317
        %v379 = vunpack.c.l.b16 %v318
        %v380 = vunpack.c.l.b16 %v319
        %v381 = vunpack.c.l.b16 %v320
        %v382 = vunpack.c.l.b16 %v321
        %v383 = vunpack.c.l.b16 %v322
        %v384 = vpack.c.b16 %v361, %v360
        %v385 = vpack.c.b16 %v363, %v362
        %v386 = vpack.c.b16 %v365, %v364
        %v387 = vpack.c.b16 %v367, %v366
        %v388 = vpack.c.b16 %v369, %v368
        %v389 = vpack.c.b16 %v371, %v370
        %v390 = vpack.c.b16 %v373, %v372
        %v391 = vpack.c.b16 %v375, %v374
        %v392 = vpack.c.b16 %v377, %v376
        %v393 = vpack.c.b16 %v379, %v378
        %v394 = vpack.c.b16 %v381, %v380
        %v395 = vpack.c.b16 %v383, %v382
        %vm408 = vcmask 523264
        %v410 = vsel %vm408, %v334, 0
        %412 = vmatpush.bf16.msra.mxu0 %v391
        %413 = vmatpush.bf16.msra.mxu0 %v390
        %414 = vmatpush.bf16.msra.mxu0 %v389
        %415 = vmatpush.bf16.msra.mxu0 %v388
        %416 = vmatpush.bf16.msra.mxu0 %v387
        %417 = vmatpush.bf16.msra.mxu0 %v386
        %418 = vmatpush.bf16.msra.mxu0 %v385
        %419 = vmatpush.bf16.msra.mxu0 %v384
        %420 = vmatmul.bf16.gmra.mxu0 %v333
        %v421 = vpop.f32.mrf.mxu0
        %v422 = vadd.f32 %v325, %v421
        %v423 = vpop.f32.mrf.mxu0
        %v424 = vadd.f32 %v325, %v423
        %425 = vdwg.mxu0
        %426 = vmatpush.bf16.msra.mxu0 0
        %427 = vmatpush.bf16.msra.mxu0 0
        %428 = vmatpush.bf16.msra.mxu0 0
        %429 = vmatpush.bf16.msra.mxu0 0
        %430 = vmatpush.bf16.msra.mxu0 %v395
        %431 = vmatpush.bf16.msra.mxu0 %v394
        %432 = vmatpush.bf16.msra.mxu0 %v393
        %433 = vmatpush.bf16.msra.mxu0 %v392
        %434 = vmatmul.bf16.gmra.mxu0 %v410
        %v435 = vpop.f32.mrf.mxu0
        %v436 = vadd.f32 %v422, %v435
        %v437 = vpop.f32.mrf.mxu0
        %v438 = vadd.f32 %v424, %v437
        %439 = vdwg.mxu0
        %v440 = vld [vmem:[#allocation7] sm:$0xf]
        %v441 = vld [vmem:[#allocation7 + $0x4] sm:$0xf]
        %v442 = vunpack.c.l.bf16 %v440
        %v443 = vunpack.c.l.bf16 %v441
        %v444 = vadd.f32 %v436, %v442
        %v445 = vadd.f32 %v438, %v443
        %v446 = vpack.c.bf16 %v444, %v444
        %v447 = vpack.c.bf16 %v445, %v445
        %448 = vst [vmem:[%s290] sm:$0xf] %v446
        %449 = vst [vmem:[%s290 + $0x4] sm:$0xf] %v447
        %s450 = sand.u32 %s148, 1
        %s451 = scalar_lea.sflag [#allocation4], %s450
        %s452 = sand.u32 %s148, 1
        %s453 = smul.addr %s452, 8
        %s454 = scalar_lea.vmem [#allocation8], %s453
        // Predicated region
        $region49: #{tpu_custom_call.1} parent=35 // pred_check
          %p455 = pneg %p158
        $region50: #{tpu_custom_call.1} parent=35 // pred_check_branch
          %457 = sbr.rel (%p455) target = $region52
        $region51: #{tpu_custom_call.1} parent=35 // pred_region
          %s458 = smul.u32 2, %s26
          %460 = vsyncadd %s451, 0
          %s461 = sadd.s32 %s27, %s458
          %s462 = smul.addr %s461, 4
          %s463 = scalar_lea.hbm %s4, %s462
          %s464 = sshll.u32 %s454, 4
          %s465 = int_to_ptr.vmem [resolvable:$true] %s464
          %s466 = sshll.u32 %s463, 4
          %s467 = int_to_ptr.hbm [resolvable:$true] %s466
          %472 = dma.vmem_to_hbm [thread:$0]  %s465, 128, %s467, %s451, 64, 64, 4
        $region52: #{tpu_custom_call.1} parent=35 // pred_fallthru
          _
      $region36: #{tpu_custom_call.1} parent=5 // pred_fallthru
        _
      %p473 = scmp.le.s32.totalorder 2, %s17
      // Predicated region
      $region53: #{tpu_custom_call.1} parent=5 // pred_check
        %p474 = pneg %p473
      $region54: #{tpu_custom_call.1} parent=5 // pred_check_branch
        %476 = sbr.rel (%p474) target = $region56
      $region55: #{tpu_custom_call.1} parent=5 // pred_region
        %s477 = ssub.s32 %s17, 2
        // Predicated region
        $region57: #{tpu_custom_call.1} parent=55 // pred_check
          %p478 = pneg %p164
        $region58: #{tpu_custom_call.1} parent=55 // pred_check_branch
          %480 = sbr.rel (%p478) target = $region60
        $region59: #{tpu_custom_call.1} parent=55 // pred_region
          %s481 = sand.u32 %s149, 1
          %s482 = scalar_lea.sflag [#allocation4], %s481
          %s483 = sand.u32 %s149, 1
          %s484 = smul.addr %s483, 8
          %s485 = scalar_lea.vmem [#allocation8], %s484
          %487 = dma.done %s482, 128
        $region60: #{tpu_custom_call.1} parent=55 // pred_fallthru
          _
      $region56: #{tpu_custom_call.1} parent=5 // pred_fallthru
        _
    $region6: #{tpu_custom_call.1} parent=1 // loop_footer
      %s21 = sadd.s32 1, %s17
    $region7: #{tpu_custom_call.1} parent=1 // loop_footer_branch
      %16 = sbr.rel target = $region3
    $region8: #{tpu_custom_call.1} parent=1 // loop_exit
      _
    %488 = vsyncpa [#allocation3], 1
    %s489 = scalar_lea.sflag [#allocation3], 1
    %490 = vsyncpa %s489, 1
    %491 = vsyncpa [#allocation6], 1
    %492 = vsyncpa [#allocation4], 1
    %s493 = scalar_lea.sflag [#allocation4], 1
    %494 = vsyncpa %s493, 1

</llo_original>
